<compile_context>
chip_gen: v6e
topology: v6e:2x2x1
jax: 0.10.0
libtpu: 0.0.40
codegen_flags: <defaults>
</compile_context>

<pallas_src>
import functools

import jax
import jax.numpy as jnp
from jax.experimental import pallas as pl
from jax.experimental.pallas import tpu as pltpu


def _reward_criterion_kernel(logp_ref, seq_ref, w_ref, out_ref, g_acc, *, n_rows):
    """Grid = (row_tiles, vocab_tiles); vocab (axis 1) is the reduction axis.

    logp_ref : (TN, L, TV)    log-prob tile (native dtype: f32 or bf16)
    seq_ref  : (TN, L, 1) i32 sampled tokens for this row tile
    w_ref    : (TN, L, 1) f32 precomputed reward * mask for this row tile
    out_ref  : (1, 8, 128)    per-row-tile partial numerator (scalar broadcast)
    g_acc    : (TN, L, 1) f32 VMEM accumulator of gathered log-probs
    """
    # Hoisted program ids — must NOT be called inside pl.when bodies.
    i = pl.program_id(0)
    k = pl.program_id(1)
    last_k = pl.num_programs(1) - 1

    @pl.when(k == 0)
    def _init():
        g_acc[...] = jnp.zeros_like(g_acc)

    logp = logp_ref[...]                               # (TN, L, TV) native dtype
    seq = seq_ref[...]                                 # (TN, L, 1)  int32
    tn, seq_len, tv = logp.shape

    # gather(2, seq) restricted to this vocab tile: tiny (1,1,TV) iota, the
    # compare broadcasts against the lane-broadcast (TN,L,1) seq.  At most one
    # lane per (n, l) is selected, so summing in native dtype is exact; only
    # the (TN, L, 1) reduction is cast to f32 for accumulation.
    local_ids = jax.lax.broadcasted_iota(jnp.int32, (1, 1, tv), 2)
    hit = local_ids == (seq - k * tv)
    picked = jnp.sum(jnp.where(hit, logp, jnp.zeros([], logp.dtype)),
                     axis=-1, keepdims=True)           # (TN, L, 1)
    g_acc[...] += picked.astype(jnp.float32)

    @pl.when(k == last_k)
    def _finalize():
        # Mask rows past N (partial last row tile reads unspecified padding).
        row = i * tn + jax.lax.broadcasted_iota(jnp.int32, (tn, seq_len, 1), 0)
        contrib = jnp.where(row < n_rows, -g_acc[...] * w_ref[...], 0.0)
        out_ref[...] = jnp.full(out_ref.shape, jnp.sum(contrib), jnp.float32)


def _choose_tiles(n, seq_len, vocab, itemsize, target_bytes=8 * 1024 * 1024):
    """Pick (row tile, #row tiles, vocab tile).

    * Row tiles: <= 8 rows, split over an even, balanced number of tiles so the
      "parallel" row axis shards evenly over v7x's two TensorCores
      (e.g. N=10 -> 5+5 instead of 8+2).  seq/w are (N, L, 1) so the row tile
      is a leading dim and need not be a multiple of 8.
    * Vocab tile: multiple of 128 lanes targeting ~8 MiB per logp block; the
      double-buffered pair (~16 MiB) fits every generation's VMEM once
      vmem_limit_bytes is raised accordingly (incl. v7x's 64 MiB physical).
    * Long-L guard: if even a 128-lane block overshoots the target, shrink the
      row tile rather than silently blowing past the VMEM budget.
    """
    n_tiles = pl.cdiv(n, 8)
    if n > 1 and n_tiles % 2 == 1:
        n_tiles += 1                                   # balance over 2 TCs (v7x)
    tn = pl.cdiv(n, n_tiles)

    min_block = seq_len * 128 * itemsize               # bytes of a (1, L, 128) block
    if tn * min_block > target_bytes:
        tn = max(1, target_bytes // min_block)
    n_row_tiles = pl.cdiv(n, tn)

    if vocab <= 128:
        tv = vocab
    else:
        cand = target_bytes // (tn * seq_len * itemsize)
        tv = int(min(vocab, max(128, (cand // 128) * 128)))
    return int(tn), int(n_row_tiles), int(tv)


def reward_criterion(logp, seq, reward):
    """logp: (N, L, V) f32/bf16, seq: (N, L) int, reward: (N, L) -> scalar f32."""
    n, seq_len, vocab = logp.shape
    seq = seq.astype(jnp.int32)
    reward = reward.astype(jnp.float32)

    # Tiny (N, L) work stays in plain XLA: shifted mask, weights, denominator.
    mask = jnp.concatenate(
        [jnp.ones((n, 1), jnp.float32), (seq[:, :-1] > 0).astype(jnp.float32)],
        axis=1)
    w = reward * mask
    den = jnp.sum(mask)

    itemsize = jnp.dtype(logp.dtype).itemsize
    tn, n_row_tiles, tv = _choose_tiles(n, seq_len, vocab, itemsize)
    n_vocab_tiles = pl.cdiv(vocab, tv)

    # (N, L, 1): row tile is a leading dim (any size), and the compare against
    # seq inside the kernel is a stride-0 lane broadcast.
    seq3 = seq[..., None]
    w3 = w[..., None]

    logp_block_bytes = tn * seq_len * tv * itemsize
    # Double-buffered logp blocks dominate; add headroom for seq/w/out/scratch.
    vmem_limit = int(min(64 * 1024 * 1024,
                         max(16 * 1024 * 1024,
                             2 * logp_block_bytes + (4 << 20))))

    kernel = functools.partial(_reward_criterion_kernel, n_rows=n)

    partials = pl.pallas_call(
        kernel,
        out_shape=jax.ShapeDtypeStruct((n_row_tiles, 8, 128), jnp.float32),
        grid_spec=pltpu.PrefetchScalarGridSpec(
            num_scalar_prefetch=0,
            grid=(n_row_tiles, n_vocab_tiles),
            in_specs=[
                pl.BlockSpec((tn, seq_len, tv), lambda i, k: (i, 0, k)),
                pl.BlockSpec((tn, seq_len, 1), lambda i, k: (i, 0, 0)),
                pl.BlockSpec((tn, seq_len, 1), lambda i, k: (i, 0, 0)),
            ],
            out_specs=pl.BlockSpec((1, 8, 128), lambda i, k: (i, 0, 0)),
            scratch_shapes=[pltpu.VMEM((tn, seq_len, 1), jnp.float32)],
        ),
        compiler_params=pltpu.CompilerParams(
            dimension_semantics=("parallel", "arbitrary"),
            vmem_limit_bytes=vmem_limit),
    )(logp, seq3, w3)

    num = jnp.sum(partials[:, 0, 0])
    return num / den


def reward_criterion_ref(logp, seq, reward):
    """Pure-JAX reference mirroring the PyTorch forward."""
    gathered = jnp.take_along_axis(logp, seq[..., None], axis=2)[..., 0]
    mask_raw = (seq > 0).astype(logp.dtype)
    mask = jnp.concatenate(
        [jnp.ones((seq.shape[0], 1), logp.dtype), mask_raw[:, :-1]], axis=1)
    out = -gathered * reward * mask
    return jnp.sum(out) / jnp.sum(mask)


if __name__ == "__main__":
    key = jax.random.PRNGKey(0)
    b, L, V = 2, 8, 32
    N = b * 5  # matches the (b*5, seq_l, v_s) convention of the module

    k1, k2, k3 = jax.random.split(key, 3)
    logp = jax.nn.log_softmax(jax.random.normal(k1, (N, L, V), jnp.float32), axis=-1)
    seq = jax.random.randint(k2, (N, L), 0, V, dtype=jnp.int32)   # 0 = pad/end token
    reward = jax.random.normal(k3, (N, L), jnp.float32)

    # f32 path
    loss = jax.block_until_ready(reward_criterion(logp, seq, reward))
    ref = jax.block_until_ready(reward_criterion_ref(logp, seq, reward))
    assert jnp.allclose(loss, ref, rtol=1e-5, atol=1e-5), (loss, ref)

    # bf16 logp path (halves HBM traffic at real sizes); compare against a
    # reference computed on the same bf16-rounded values.
    logp_bf16 = logp.astype(jnp.bfloat16)
    loss_bf = jax.block_until_ready(reward_criterion(logp_bf16, seq, reward))
    ref_bf = jax.block_until_ready(
        reward_criterion_ref(logp_bf16.astype(jnp.float32), seq, reward))
    assert jnp.allclose(loss_bf, ref_bf, rtol=1e-4, atol=1e-4), (loss_bf, ref_bf)

    print("KERNEL_OK")
</pallas_src>

<mosaic_0001>
module attributes {stable_mosaic.version = 11 : i64} {
  func.func @_reward_criterion_kernel(%arg0: i32, %arg1: i32, %arg2: memref<5x8x32xf32, #tpu.memory_space<vmem>>, %arg3: memref<5x8x1xi32, #tpu.memory_space<vmem>>, %arg4: memref<5x8x1xf32, #tpu.memory_space<vmem>>, %arg5: memref<1x8x128xf32, #tpu.memory_space<vmem>>, %arg6: memref<5x8x1xf32, #tpu.memory_space<vmem>>) attributes {dimension_semantics = [#tpu.dimension_semantics<parallel>, #tpu.dimension_semantics<arbitrary>], iteration_bounds = array<i64: 2, 1>, scalar_prefetch = 0 : i64, scratch_operands = 1 : i64, tpu.core_type = #tpu.core_type<tc>, window_params = [{transform_indices = @transform_0, window_bounds = array<i64: 5, 8, 32>}, {transform_indices = @transform_1, window_bounds = array<i64: 5, 8, 1>}, {transform_indices = @transform_2, window_bounds = array<i64: 5, 8, 1>}, {transform_indices = @transform_3, window_bounds = array<i64: 1, 8, 128>}]} {
    %c0_i32 = arith.constant 0 : i32
    %0 = arith.cmpi eq, %arg1, %c0_i32 : i32
    %1 = arith.extui %0 : i1 to i32
    %c0_i32_0 = arith.constant 0 : i32
    %2 = arith.cmpi ne, %1, %c0_i32_0 : i32
    scf.if %2 {
      %cst_15 = arith.constant 0.000000e+00 : f32
      %22 = vector.broadcast %cst_15 : f32 to vector<5x8x1xf32>
      %c0_16 = arith.constant 0 : index
      %c0_17 = arith.constant 0 : index
      %c0_18 = arith.constant 0 : index
      %23 = vector.load %arg6[%c0_16, %c0_17, %c0_18] : memref<5x8x1xf32, #tpu.memory_space<vmem>>, vector<5x8x1xf32>
      tpu.vector_store %arg6[%c0_16, %c0_17, %c0_18], %22 {strides = array<i32>} : memref<5x8x1xf32, #tpu.memory_space<vmem>>, vector<5x8x1xf32>,
    } else {
    }
    %c0 = arith.constant 0 : index
    %c0_1 = arith.constant 0 : index
    %c0_2 = arith.constant 0 : index
    %3 = vector.load %arg2[%c0, %c0_1, %c0_2] : memref<5x8x32xf32, #tpu.memory_space<vmem>>, vector<5x8x32xf32>
    %c0_3 = arith.constant 0 : index
    %c0_4 = arith.constant 0 : index
    %c0_5 = arith.constant 0 : index
    %4 = vector.load %arg3[%c0_3, %c0_4, %c0_5] : memref<5x8x1xi32, #tpu.memory_space<vmem>>, vector<5x8x1xi32>
    %5 = tpu.iota {dimensions = array<i32: 2>} : vector<1x1x32xi32>
    %c32_i32 = arith.constant 32 : i32
    %6 = arith.muli %arg1, %c32_i32 : i32
    %7 = vector.broadcast %6 : i32 to vector<5x8x1xi32>
    %8 = arith.subi %4, %7 : vector<5x8x1xi32>
    %9 = vector.broadcast %5 : vector<1x1x32xi32> to vector<5x8x32xi32>
    %10 = vector.broadcast %8 : vector<5x8x1xi32> to vector<5x8x32xi32>
    %11 = arith.cmpi eq, %9, %10 : vector<5x8x32xi32>
    %cst = arith.constant 0.000000e+00 : f32
    %12 = vector.broadcast %cst : f32 to vector<5x8x32xf32>
    %13 = arith.select %11, %3, %12 : vector<5x8x32xi1>, vector<5x8x32xf32>
    %cst_6 = arith.constant dense<0.000000e+00> : vector<5x8xf32>
    %14 = vector.multi_reduction <add>, %13, %cst_6 [2] : vector<5x8x32xf32> to vector<5x8xf32>
    %15 = vector.shape_cast %14 : vector<5x8xf32> to vector<5x8x1xf32>
    %c0_7 = arith.constant 0 : index
    %c0_8 = arith.constant 0 : index
    %c0_9 = arith.constant 0 : index
    %16 = vector.load %arg6[%c0_7, %c0_8, %c0_9] : memref<5x8x1xf32, #tpu.memory_space<vmem>>, vector<5x8x1xf32>
    %17 = arith.addf %16, %15 : vector<5x8x1xf32>
    %c0_10 = arith.constant 0 : index
    %c0_11 = arith.constant 0 : index
    %c0_12 = arith.constant 0 : index
    %18 = vector.load %arg6[%c0_10, %c0_11, %c0_12] : memref<5x8x1xf32, #tpu.memory_space<vmem>>, vector<5x8x1xf32>
    tpu.vector_store %arg6[%c0_10, %c0_11, %c0_12], %17 {strides = array<i32>} : memref<5x8x1xf32, #tpu.memory_space<vmem>>, vector<5x8x1xf32>,
    %c0_i32_13 = arith.constant 0 : i32
    %19 = arith.cmpi eq, %arg1, %c0_i32_13 : i32
    %20 = arith.extui %19 : i1 to i32
    %c0_i32_14 = arith.constant 0 : i32
    %21 = arith.cmpi ne, %20, %c0_i32_14 : i32
    scf.if %21 {
      %c5_i32 = arith.constant 5 : i32
      %22 = arith.muli %arg0, %c5_i32 : i32
      %23 = tpu.iota {dimensions = array<i32: 0>} : vector<5x8x1xi32>
      %24 = vector.broadcast %22 : i32 to vector<5x8x1xi32>
      %25 = arith.addi %24, %23 : vector<5x8x1xi32>
      %c10_i32 = arith.constant 10 : i32
      %26 = vector.broadcast %c10_i32 : i32 to vector<5x8x1xi32>
      %27 = arith.cmpi slt, %25, %26 : vector<5x8x1xi32>
      %c0_15 = arith.constant 0 : index
      %c0_16 = arith.constant 0 : index
      %c0_17 = arith.constant 0 : index
      %28 = vector.load %arg6[%c0_15, %c0_16, %c0_17] : memref<5x8x1xf32, #tpu.memory_space<vmem>>, vector<5x8x1xf32>
      %cst_18 = arith.constant 0.000000e+00 : f32
      %29 = vector.broadcast %cst_18 : f32 to vector<5x8x1xf32>
      %30 = arith.subf %29, %28 : vector<5x8x1xf32>
      %c0_19 = arith.constant 0 : index
      %c0_20 = arith.constant 0 : index
      %c0_21 = arith.constant 0 : index
      %31 = vector.load %arg4[%c0_19, %c0_20, %c0_21] : memref<5x8x1xf32, #tpu.memory_space<vmem>>, vector<5x8x1xf32>
      %32 = arith.mulf %30, %31 : vector<5x8x1xf32>
      %cst_22 = arith.constant 0.000000e+00 : f32
      %33 = vector.broadcast %cst_22 : f32 to vector<5x8x1xf32>
      %34 = arith.select %27, %32, %33 : vector<5x8x1xi1>, vector<5x8x1xf32>
      %35 = vector.shape_cast %34 : vector<5x8x1xf32> to vector<1x5x8x1xf32>
      %cst_23 = arith.constant dense<0.000000e+00> : vector<1xf32>
      %36 = vector.multi_reduction <add>, %35, %cst_23 [1, 2, 3] : vector<1x5x8x1xf32> to vector<1xf32>
      %37 = vector.shape_cast %36 : vector<1xf32> to vector<1x1x1x1xf32>
      %38 = vector.extract %37[0, 0, 0, 0] : f32 from vector<1x1x1x1xf32>
      %39 = vector.broadcast %38 : f32 to vector<1x8x128xf32>
      %c0_24 = arith.constant 0 : index
      %c0_25 = arith.constant 0 : index
      %c0_26 = arith.constant 0 : index
      %40 = vector.load %arg5[%c0_24, %c0_25, %c0_26] : memref<1x8x128xf32, #tpu.memory_space<vmem>>, vector<1x8x128xf32>
      tpu.vector_store %arg5[%c0_24, %c0_25, %c0_26], %39 {strides = array<i32>} : memref<1x8x128xf32, #tpu.memory_space<vmem>>, vector<1x8x128xf32>,
    } else {
    }
    return
  }
  func.func @transform_0(%arg0: i32, %arg1: i32) -> (i32, i32, i32) {
    %c0_i32 = arith.constant 0 : i32
    %c0_i32_0 = arith.constant 0 : i32
    return %arg0, %c0_i32, %arg1 : i32, i32, i32
  }
  func.func @transform_1(%arg0: i32, %arg1: i32) -> (i32, i32, i32) {
    %c0_i32 = arith.constant 0 : i32
    %c0_i32_0 = arith.constant 0 : i32
    %c0_i32_1 = arith.constant 0 : i32
    return %arg0, %c0_i32, %c0_i32_0 : i32, i32, i32
  }
  func.func @transform_2(%arg0: i32, %arg1: i32) -> (i32, i32, i32) {
    %c0_i32 = arith.constant 0 : i32
    %c0_i32_0 = arith.constant 0 : i32
    %c0_i32_1 = arith.constant 0 : i32
    return %arg0, %c0_i32, %c0_i32_0 : i32, i32, i32
  }
  func.func @transform_3(%arg0: i32, %arg1: i32) -> (i32, i32, i32) {
    %c0_i32 = arith.constant 0 : i32
    %c0_i32_0 = arith.constant 0 : i32
    %c0_i32_1 = arith.constant 0 : i32
    return %arg0, %c0_i32, %c0_i32_0 : i32, i32, i32
  }
}

</mosaic_0001>

<llo_original>
// kernel: tpu_custom_call.1
$region0: #{tpu_custom_call.1}
  #allocation0 [shape = 'u32[]', space=smem, size = 0x4, offset = 0x4, fixed_abs, tag = 'smem constant byte address 0x4 - core index']
  #allocation1 [shape = 'u32[144,128]{1,0:T(1,128)}', space=vmem, size = 0x12000, scoped, tag = 'internal scratch']
  #allocation2 [shape = 'f32[5,8,1]{2,1,0:T(8,128)}', space=vmem, size = 0x5000, scoped, tag = 'scratch operand']
  %s0 = inlined_call_operand.vmem [shape: f32[10,8,32], index: 0, kind: input, shape index: {}]
  %s1 = inlined_call_operand.vmem [shape: s32[10,8,1], index: 1, kind: input, shape index: {}]
  %s2 = inlined_call_operand.vmem [shape: f32[10,8,1], index: 2, kind: input, shape index: {}]
  %s3 = inlined_call_operand.hbm [shape: f32[2,8,128], index: 3, kind: output, shape index: {}]
  %s4 = sld [smem:[#allocation0]]
  $region53: #{tpu_custom_call.1} parent=0
    _
  %s6 = ssub.s32 1, %s4
  %s7 = scalar_select 0, %s6, %s4
  $region1: #{tpu_custom_call.1} parent=0
    #allocation3 [shape = 'u8[8192]{0}', space=vmem, size = 0x2000, scoped, tag = 'output window, operand 0']
    #allocation4 [shape = 's32[2]{0}', space=sflag, size = 0x8, scoped, tag = 'scoped memory for tpu_custom_call.1']
    %8 = vsyncpa [#allocation4], 0
    %s9 = scalar_lea.sflag [#allocation4], 1
    %10 = vsyncpa %s9, 0
    loop: start=0, step=1, limit=4
    $region2: #{tpu_custom_call.1} parent=1 // loop_pre_header
      _
    $region3: #{tpu_custom_call.1} parent=1 // loop_header
      %s12 = sphi 0, %s16
      %p13 = scmp.ge.s32.totalorder %s12, 4
      %s19 = sphi 0, %s31
      %s20 = sphi 0, %s27
      %s21 = sphi 0, %s19
      %s22 = sphi 0, %s20
      %s23 = sphi 0, %s21
      %s24 = sphi 0, %s22
      %s36 = sphi 0, %s38
      %s39 = sphi 0, %s36
      %s40 = sphi 0, %s39
      %s56 = sphi 0, %s40
      %s62 = sphi 0, %s64
      %s65 = sphi 0, %s62
      %s66 = sphi 0, %s65
      %s82 = sphi 0, %s66
      %s88 = sphi 0, %s90
      %s91 = sphi 0, %s88
      %s92 = sphi 0, %s91
      %s108 = sphi 0, %s92
      %s114 = sphi 0, %s116
      %s117 = sphi 0, %s114
      %s118 = sphi 0, %s117
      %s134 = sphi 0, %s118
    $region4: #{tpu_custom_call.1} parent=1 // loop_header_branch
      %15 = sbr.rel (%p13) target = $region8
    $region5: #{tpu_custom_call.1} parent=1 // loop_body
      %s17 = ssub.s32 %s12, 1
      %s18 = ssub.s32 %s12, 2
      %s25 = sadd.s32 1, %s20
      %p26 = scmp.ge.s32.totalorder %s25, 1
      %s27 = scalar_select %p26, 0, %s25
      %s28 = sadd.s32 1, %s19
      %s29 = scalar_select %p26, %s28, %s19
      %p30 = scmp.ge.s32.totalorder %s29, 2
      %s31 = scalar_select %p30, 0, %s29
      %s32 = ssub.s32 %s19, %s31
      %s33 = ssub.s32 %s20, %s27
      %s34 = sor.u32 %s32, %s33
      %p35 = scmp.eq.s32.totalorder %s34, 0
      %s37 = sadd.s32 %s36, 1
      %s38 = scalar_select %p35, %s36, %s37
      %p41 = pneg %p35
      %p42 = scmp.eq.s32.totalorder %s12, 1
      %p43 = por %p41, %p42
      %p44 = scmp.ne.s32.totalorder %s36, %s39
      %p45 = scmp.eq.s32.totalorder %s12, 0
      %p46 = por %p44, %p45
      %p47 = scmp.ne.s32.totalorder %s36, %s39
      %p48 = scmp.eq.s32.totalorder %s17, 1
      %p49 = por %p47, %p48
      %p50 = scmp.ne.s32.totalorder %s39, %s40
      %p51 = scmp.eq.s32.totalorder %s17, 0
      %p52 = por %p50, %p51
      %p53 = scmp.ne.s32.totalorder %s39, %s40
      %p54 = scmp.eq.s32.totalorder %s18, 1
      %p55 = por %p53, %p54
      %p57 = scmp.ne.s32.totalorder %s40, %s56
      %p58 = scmp.eq.s32.totalorder %s18, 0
      %p59 = por %p57, %p58
      %s60 = ssub.s32 %s19, %s31
      %p61 = scmp.eq.s32.totalorder %s60, 0
      %s63 = sadd.s32 %s62, 1
      %s64 = scalar_select %p61, %s62, %s63
      %p67 = pneg %p61
      %p68 = scmp.eq.s32.totalorder %s12, 1
      %p69 = por %p67, %p68
      %p70 = scmp.ne.s32.totalorder %s62, %s65
      %p71 = scmp.eq.s32.totalorder %s12, 0
      %p72 = por %p70, %p71
      %p73 = scmp.ne.s32.totalorder %s62, %s65
      %p74 = scmp.eq.s32.totalorder %s17, 1
      %p75 = por %p73, %p74
      %p76 = scmp.ne.s32.totalorder %s65, %s66
      %p77 = scmp.eq.s32.totalorder %s17, 0
      %p78 = por %p76, %p77
      %p79 = scmp.ne.s32.totalorder %s65, %s66
      %p80 = scmp.eq.s32.totalorder %s18, 1
      %p81 = por %p79, %p80
      %p83 = scmp.ne.s32.totalorder %s66, %s82
      %p84 = scmp.eq.s32.totalorder %s18, 0
      %p85 = por %p83, %p84
      %s86 = ssub.s32 %s19, %s31
      %p87 = scmp.eq.s32.totalorder %s86, 0
      %s89 = sadd.s32 %s88, 1
      %s90 = scalar_select %p87, %s88, %s89
      %p93 = pneg %p87
      %p94 = scmp.eq.s32.totalorder %s12, 1
      %p95 = por %p93, %p94
      %p96 = scmp.ne.s32.totalorder %s88, %s91
      %p97 = scmp.eq.s32.totalorder %s12, 0
      %p98 = por %p96, %p97
      %p99 = scmp.ne.s32.totalorder %s88, %s91
      %p100 = scmp.eq.s32.totalorder %s17, 1
      %p101 = por %p99, %p100
      %p102 = scmp.ne.s32.totalorder %s91, %s92
      %p103 = scmp.eq.s32.totalorder %s17, 0
      %p104 = por %p102, %p103
      %p105 = scmp.ne.s32.totalorder %s91, %s92
      %p106 = scmp.eq.s32.totalorder %s18, 1
      %p107 = por %p105, %p106
      %p109 = scmp.ne.s32.totalorder %s92, %s108
      %p110 = scmp.eq.s32.totalorder %s18, 0
      %p111 = por %p109, %p110
      %s112 = ssub.s32 %s19, %s31
      %p113 = scmp.eq.s32.totalorder %s112, 0
      %s115 = sadd.s32 %s114, 1
      %s116 = scalar_select %p113, %s114, %s115
      %p119 = pneg %p113
      %p120 = scmp.eq.s32.totalorder %s12, 1
      %p121 = por %p119, %p120
      %p122 = scmp.ne.s32.totalorder %s114, %s117
      %p123 = scmp.eq.s32.totalorder %s12, 0
      %p124 = por %p122, %p123
      %p125 = scmp.ne.s32.totalorder %s114, %s117
      %p126 = scmp.eq.s32.totalorder %s17, 1
      %p127 = por %p125, %p126
      %p128 = scmp.ne.s32.totalorder %s117, %s118
      %p129 = scmp.eq.s32.totalorder %s17, 0
      %p130 = por %p128, %p129
      %p131 = scmp.ne.s32.totalorder %s117, %s118
      %p132 = scmp.eq.s32.totalorder %s18, 1
      %p133 = por %p131, %p132
      %p135 = scmp.ne.s32.totalorder %s118, %s134
      %p136 = scmp.eq.s32.totalorder %s18, 0
      %p137 = por %p135, %p136
      %p138 = scmp.le.s32.totalorder 1, %s12
      %p139 = scmp.lt.s32.totalorder %s12, 3
      %p140 = pnand %p138, %p139
      %p141 = pneg %p140
      // Predicated region
      $region9: #{tpu_custom_call.1} parent=5 // pred_check
        _
      $region10: #{tpu_custom_call.1} parent=5 // pred_check_branch
        %143 = sbr.rel (%p140) target = $region12
      $region11: #{tpu_custom_call.1} parent=5 // pred_region
        %s144 = ssub.s32 %s12, 1
      $region12: #{tpu_custom_call.1} parent=5 // pred_fallthru
        _
      %p145 = scmp.lt.s32.totalorder %s12, 2
      // Predicated region
      $region13: #{tpu_custom_call.1} parent=5 // pred_check
        %p146 = pneg %p145
      $region14: #{tpu_custom_call.1} parent=5 // pred_check_branch
        %148 = sbr.rel (%p146) target = $region16
      $region15: #{tpu_custom_call.1} parent=5 // pred_region
        // Predicated region
        $region17: #{tpu_custom_call.1} parent=15 // pred_check
          %p149 = pneg %p46
        $region18: #{tpu_custom_call.1} parent=15 // pred_check_branch
          %151 = sbr.rel (%p149) target = $region20
        $region19: #{tpu_custom_call.1} parent=15 // pred_region
          %s152 = smul.u32 5, %s19
          %p153 = scmp.lt.s32.totalorder %s152, 9
          %s154 = scalar_select %p153, %s152, 9
          %p155 = scmp.lt.s32.totalorder %s20, 0
          %s156 = scalar_select %p155, %s20, 0
          %s157 = sadd.s32 %s156, %s154
          %s158 = smul.addr %s157, 8
          %s159 = scalar_lea.vmem %s0, %s158
          %s160 = smul.u32 5, %s19
        $region20: #{tpu_custom_call.1} parent=15 // pred_fallthru
          _
        // Predicated region
        $region21: #{tpu_custom_call.1} parent=15 // pred_check
          %p161 = pneg %p72
        $region22: #{tpu_custom_call.1} parent=15 // pred_check_branch
          %163 = sbr.rel (%p161) target = $region24
        $region23: #{tpu_custom_call.1} parent=15 // pred_region
          %s164 = smul.u32 5, %s19
          %p165 = scmp.lt.s32.totalorder %s164, 9
          %s166 = scalar_select %p165, %s164, 9
          %s167 = smul.addr %s166, 8
          %s168 = scalar_lea.vmem %s1, %s167
          %s169 = smul.u32 5, %s19
        $region24: #{tpu_custom_call.1} parent=15 // pred_fallthru
          _
        // Predicated region
        $region25: #{tpu_custom_call.1} parent=15 // pred_check
          %p170 = pneg %p98
        $region26: #{tpu_custom_call.1} parent=15 // pred_check_branch
          %172 = sbr.rel (%p170) target = $region28
        $region27: #{tpu_custom_call.1} parent=15 // pred_region
          %s173 = smul.u32 5, %s19
          %p174 = scmp.lt.s32.totalorder %s173, 9
          %s175 = scalar_select %p174, %s173, 9
          %s176 = smul.addr %s175, 8
          %s177 = scalar_lea.vmem %s2, %s176
          %s178 = smul.u32 5, %s19
        $region28: #{tpu_custom_call.1} parent=15 // pred_fallthru
          _
      $region16: #{tpu_custom_call.1} parent=5 // pred_fallthru
        _
      %p179 = scmp.le.s32.totalorder 1, %s12
      %p180 = scmp.lt.s32.totalorder %s12, 3
      %p181 = pnand %p179, %p180
      %p182 = pneg %p181
      // Predicated region
      $region29: #{tpu_custom_call.1} parent=5 // pred_check
        _
      $region30: #{tpu_custom_call.1} parent=5 // pred_check_branch
        %184 = sbr.rel (%p181) target = $region32
      $region31: #{tpu_custom_call.1} parent=5 // pred_region
        %s185 = ssub.s32 %s12, 1
        %s186 = smul.u32 5, %s21
        %p187 = scmp.lt.s32.totalorder %s186, 9
        %s188 = scalar_select %p187, %s186, 9
        %p189 = scmp.lt.s32.totalorder %s22, 0
        %s190 = scalar_select %p189, %s22, 0
        %s191 = sadd.s32 %s190, %s188
        %s192 = smul.addr %s191, 8
        %s193 = scalar_lea.vmem %s0, %s192
        %p194 = pneg %p52
        %p195 = pneg %p49
        %s196 = smul.u32 5, %s21
        %p197 = scmp.lt.s32.totalorder %s196, 9
        %s198 = scalar_select %p197, %s196, 9
        %s199 = smul.addr %s198, 8
        %s200 = scalar_lea.vmem %s1, %s199
        %p201 = pneg %p78
        %p202 = pneg %p75
        %s203 = smul.u32 5, %s21
        %p204 = scmp.lt.s32.totalorder %s203, 9
        %s205 = scalar_select %p204, %s203, 9
        %s206 = smul.addr %s205, 8
        %s207 = scalar_lea.vmem %s2, %s206
        %p208 = pneg %p104
        %p209 = pneg %p101
        %p210 = pneg %p130
        %p211 = pneg %p127
        %s212 = sand.u32 %s117, 1
        %s213 = scalar_lea.sflag [#allocation4], %s212
        %s214 = sand.u32 %s117, 1
        %s215 = smul.addr %s214, 8
        %s216 = scalar_lea.vmem [#allocation3], %s215
        %s217 = smul.u32 5, %s21
        %p218 = scmp.lt.s32.totalorder %s217, 9
        %s219 = scalar_select %p218, %s217, 9
        %p220 = scmp.lt.s32.totalorder %s22, 0
        %s221 = scalar_select %p220, %s22, 0
        %s222 = sadd.s32 %s221, %s219
        %s223 = smul.addr %s222, 8
        %s224 = scalar_lea.vmem %s0, %s223
        %s225 = smul.u32 5, %s21
        %s226 = smul.u32 5, %s21
        %p227 = scmp.lt.s32.totalorder %s226, 9
        %s228 = scalar_select %p227, %s226, 9
        %s229 = smul.addr %s228, 8
        %s230 = scalar_lea.vmem %s1, %s229
        %s231 = smul.u32 5, %s21
        %s232 = smul.u32 5, %s21
        %p233 = scmp.lt.s32.totalorder %s232, 9
        %s234 = scalar_select %p233, %s232, 9
        %s235 = smul.addr %s234, 8
        %s236 = scalar_lea.vmem %s2, %s235
        %s237 = smul.u32 5, %s21
        %p238 = scmp.eq.s32.totalorder %s22, 0
        // Predicated region
        $region33: #{tpu_custom_call.1} parent=31 // pred_check
          %p239 = pneg %p238
        $region34: #{tpu_custom_call.1} parent=31 // pred_check_branch
          %241 = sbr.rel (%p239) target = $region36
        $region35: #{tpu_custom_call.1} parent=31 // pred_region
          %vm242 = vcmask 7168
          %243 = vst.msk [vmem:[#allocation2] sm:$0xff] %vm242, 0.0
          %244 = vst.msk [vmem:[#allocation2 + $0x8] sm:$0xff] %vm242, 0.0
          %245 = vst.msk [vmem:[#allocation2 + $0x10] sm:$0xff] %vm242, 0.0
          %246 = vst.msk [vmem:[#allocation2 + $0x18] sm:$0xff] %vm242, 0.0
          %247 = vst.msk [vmem:[#allocation2 + $0x20] sm:$0xff] %vm242, 0.0
        $region36: #{tpu_custom_call.1} parent=31 // pred_fallthru
          _
        %v248 = vld [vmem:[%s224] sm:$0xff]
        %v249 = vld [vmem:[%s224 + $0x8] sm:$0xff]
        %v250 = vld [vmem:[%s224 + $0x10] sm:$0xff]
        %v251 = vld [vmem:[%s224 + $0x18] sm:$0xff]
        %v252 = vld [vmem:[%s224 + $0x20] sm:$0xff]
        %v253 = vld [vmem:[%s230] sm:$0xff]
        %v254 = vld [vmem:[%s230 + $0x8] sm:$0xff]
        %v255 = vld [vmem:[%s230 + $0x10] sm:$0xff]
        %v256 = vld [vmem:[%s230 + $0x18] sm:$0xff]
        %v257 = vld [vmem:[%s230 + $0x20] sm:$0xff]
        %v258 = vlaneseq
        %v259 = vand.u32 %v258, 127
        %s260 = smul.u32 %s22, 32
        %v261 = vstv %s260
        %v262 = vsub.s32 %v253, %v261
        %v263 = vsub.s32 %v254, %v261
        %v264 = vsub.s32 %v255, %v261
        %v265 = vsub.s32 %v256, %v261
        %v266 = vsub.s32 %v257, %v261
        %267 = vset.pattern.permute.xlu0 0
        %268 = vperm.xlu0 %267, %v262
        %v269 = vpop.permute.xlu0 %268
        %270 = vset.pattern.permute.xlu0 0
        %271 = vperm.xlu0 %270, %v263
        %v272 = vpop.permute.xlu0 %271
        %273 = vset.pattern.permute.xlu0 0
        %274 = vperm.xlu0 %273, %v264
        %v275 = vpop.permute.xlu0 %274
        %276 = vset.pattern.permute.xlu0 0
        %277 = vperm.xlu0 %276, %v265
        %v278 = vpop.permute.xlu0 %277
        %279 = vset.pattern.permute.xlu0 0
        %280 = vperm.xlu0 %279, %v266
        %v281 = vpop.permute.xlu0 %280
        %vm282 = vcmp.eq.s32.totalorder %v259, %v269
        %vm283 = vcmp.eq.s32.totalorder %v259, %v272
        %vm284 = vcmp.eq.s32.totalorder %v259, %v275
        %vm285 = vcmp.eq.s32.totalorder %v259, %v278
        %vm286 = vcmp.eq.s32.totalorder %v259, %v281
        %v287 = vsel %vm282, %v248, 0.0
        %v288 = vsel %vm283, %v249, 0.0
        %v289 = vsel %vm284, %v250, 0.0
        %v290 = vsel %vm285, %v251, 0.0
        %v291 = vsel %vm286, %v252, 0.0
        %vm292 = vcmask 261120
        %v293 = vsel %vm292, %v287, 0.0
        %294 = vadd.xlane.f32.xlu0 %v293
        %v295 = vpop.xlane.xlu0 %294
        %v296 = vsel %vm292, %v288, 0.0
        %297 = vadd.xlane.f32.xlu0 %v296
        %v298 = vpop.xlane.xlu0 %297
        %v299 = vsel %vm292, %v289, 0.0
        %300 = vadd.xlane.f32.xlu0 %v299
        %v301 = vpop.xlane.xlu0 %300
        %v302 = vsel %vm292, %v290, 0.0
        %303 = vadd.xlane.f32.xlu0 %v302
        %v304 = vpop.xlane.xlu0 %303
        %v305 = vsel %vm292, %v291, 0.0
        %306 = vadd.xlane.f32.xlu0 %v305
        %v307 = vpop.xlane.xlu0 %306
        %v308 = vld [vmem:[#allocation2] sm:$0xff]
        %v309 = vld [vmem:[#allocation2 + $0x8] sm:$0xff]
        %v310 = vld [vmem:[#allocation2 + $0x10] sm:$0xff]
        %v311 = vld [vmem:[#allocation2 + $0x18] sm:$0xff]
        %v312 = vld [vmem:[#allocation2 + $0x20] sm:$0xff]
        %v313 = vadd.f32 %v308, %v295
        %v314 = vadd.f32 %v309, %v298
        %v315 = vadd.f32 %v310, %v301
        %v316 = vadd.f32 %v311, %v304
        %v317 = vadd.f32 %v312, %v307
        %vm318 = vcmask 7168
        %319 = vst.msk [vmem:[#allocation2] sm:$0xff] %vm318, %v313
        %320 = vst.msk [vmem:[#allocation2 + $0x8] sm:$0xff] %vm318, %v314
        %321 = vst.msk [vmem:[#allocation2 + $0x10] sm:$0xff] %vm318, %v315
        %322 = vst.msk [vmem:[#allocation2 + $0x18] sm:$0xff] %vm318, %v316
        %323 = vst.msk [vmem:[#allocation2 + $0x20] sm:$0xff] %vm318, %v317
        // Predicated region
        $region37: #{tpu_custom_call.1} parent=31 // pred_check
          %p324 = pneg %p238
        $region38: #{tpu_custom_call.1} parent=31 // pred_check_branch
          %326 = sbr.rel (%p324) target = $region40
        $region39: #{tpu_custom_call.1} parent=31 // pred_region
          %s327 = smul.u32 %s21, 5
          %v328 = vstv %s327
          %v329 = vadd.s32 %v328, 1
          %v330 = vadd.s32 %v328, 2
          %v331 = vadd.s32 %v328, 3
          %v332 = vadd.s32 %v328, 4
          %vm333 = vcmp.lt.s32.totalorder %v328, 10
          %vm334 = vcmp.lt.s32.totalorder %v329, 10
          %vm335 = vcmp.lt.s32.totalorder %v330, 10
          %vm336 = vcmp.lt.s32.totalorder %v331, 10
          %vm337 = vcmp.lt.s32.totalorder %v332, 10
          %v338 = vld [vmem:[#allocation2] sm:$0xff]
          %v339 = vld [vmem:[#allocation2 + $0x8] sm:$0xff]
          %v340 = vld [vmem:[#allocation2 + $0x10] sm:$0xff]
          %v341 = vld [vmem:[#allocation2 + $0x18] sm:$0xff]
          %v342 = vld [vmem:[#allocation2 + $0x20] sm:$0xff]
          %v343 = vsub.f32 0.0, %v338
          %v344 = vsub.f32 0.0, %v339
          %v345 = vsub.f32 0.0, %v340
          %v346 = vsub.f32 0.0, %v341
          %v347 = vsub.f32 0.0, %v342
          %v348 = vld [vmem:[%s236] sm:$0xff]
          %v349 = vld [vmem:[%s236 + $0x8] sm:$0xff]
          %v350 = vld [vmem:[%s236 + $0x10] sm:$0xff]
          %v351 = vld [vmem:[%s236 + $0x18] sm:$0xff]
          %v352 = vld [vmem:[%s236 + $0x20] sm:$0xff]
          %v353 = vmul.f32 %v343, %v348
          %v354 = vmul.f32 %v344, %v349
          %v355 = vmul.f32 %v345, %v350
          %v356 = vmul.f32 %v346, %v351
          %v357 = vmul.f32 %v347, %v352
          %v358 = vsel %vm333, %v353, 0.0
          %v359 = vsel %vm334, %v354, 0.0
          %v360 = vsel %vm335, %v355, 0.0
          %v361 = vsel %vm336, %v356, 0.0
          %v362 = vsel %vm337, %v357, 0.0
          %v363 = vsel %vm318, %v358, 0.0
          %v364 = vsel %vm318, %v359, 0.0
          %v365 = vadd.f32 %v363, %v364
          %v366 = vsel %vm318, %v360, 0.0
          %v367 = vadd.f32 %v365, %v366
          %v368 = vsel %vm318, %v361, 0.0
          %v369 = vadd.f32 %v367, %v368
          %v370 = vsel %vm318, %v362, 0.0
          %v371 = vadd.f32 %v369, %v370
          %372 = vadd.xlane.f32.xlu0 %v371
          %v373 = vpop.xlane.xlu0 %372
          %v374 = vrot.slane %v373, 4
          %v375 = vadd.f32 %v373, %v374
          %v376 = vrot.slane %v375, 2
          %v377 = vadd.f32 %v375, %v376
          %v378 = vrot.slane %v377, 1
          %v379 = vadd.f32 %v377, %v378
          %s380 = vtos %v379
          %v381 = vstv %s380
          %382 = vst [vmem:[%s216] sm:$0xff] %v381
        $region40: #{tpu_custom_call.1} parent=31 // pred_fallthru
          _
        %s383 = sand.u32 %s117, 1
        %s384 = scalar_lea.sflag [#allocation4], %s383
        %s385 = sand.u32 %s117, 1
        %s386 = smul.addr %s385, 8
        %s387 = scalar_lea.vmem [#allocation3], %s386
        // Predicated region
        $region41: #{tpu_custom_call.1} parent=31 // pred_check
          %p388 = pneg %p127
        $region42: #{tpu_custom_call.1} parent=31 // pred_check_branch
          %390 = sbr.rel (%p388) target = $region44
        $region43: #{tpu_custom_call.1} parent=31 // pred_region
          %s392 = ssub.s32 128, 128
          %393 = vsyncadd %s384, %s392
          %s394 = smul.addr %s21, 128
          %s395 = scalar_lea.hbm %s3, %s394
          %s397 = sshll.u32 %s387, 4
          %s398 = int_to_ptr.vmem [resolvable:$true] %s397
          %400 = dma.vmem_to_hbm [thread:$0]  %s398, 128, %s395, %s384
        $region44: #{tpu_custom_call.1} parent=31 // pred_fallthru
          _
      $region32: #{tpu_custom_call.1} parent=5 // pred_fallthru
        _
      %p401 = scmp.le.s32.totalorder 2, %s12
      // Predicated region
      $region45: #{tpu_custom_call.1} parent=5 // pred_check
        %p402 = pneg %p401
      $region46: #{tpu_custom_call.1} parent=5 // pred_check_branch
        %404 = sbr.rel (%p402) target = $region48
      $region47: #{tpu_custom_call.1} parent=5 // pred_region
        %s405 = ssub.s32 %s12, 2
        // Predicated region
        $region49: #{tpu_custom_call.1} parent=47 // pred_check
          %p406 = pneg %p133
        $region50: #{tpu_custom_call.1} parent=47 // pred_check_branch
          %408 = sbr.rel (%p406) target = $region52
        $region51: #{tpu_custom_call.1} parent=47 // pred_region
          %s409 = sand.u32 %s118, 1
          %s410 = scalar_lea.sflag [#allocation4], %s409
          %s411 = sand.u32 %s118, 1
          %s412 = smul.addr %s411, 8
          %s413 = scalar_lea.vmem [#allocation3], %s412
          %414 = dma.done %s410, 128
        $region52: #{tpu_custom_call.1} parent=47 // pred_fallthru
          _
      $region48: #{tpu_custom_call.1} parent=5 // pred_fallthru
        _
    $region6: #{tpu_custom_call.1} parent=1 // loop_footer
      %s16 = sadd.s32 1, %s12
    $region7: #{tpu_custom_call.1} parent=1 // loop_footer_branch
      %11 = sbr.rel target = $region3
    $region8: #{tpu_custom_call.1} parent=1 // loop_exit
      _
    %415 = vsyncpa [#allocation4], 1
    %s416 = scalar_lea.sflag [#allocation4], 1
    %417 = vsyncpa %s416, 1

</llo_original>
